<compile_context>
chip_gen: v7x
topology: tpu7x:2x2x1
jax: 0.10.0
libtpu: 0.0.40
codegen_flags: <defaults>
</compile_context>

<pallas_src>
import jax
import jax.numpy as jnp
from jax.experimental import pallas as pl
from jax.experimental.pallas import tpu as pltpu

INPUT_SIZE = 29
HIDDEN = 20
OUTPUT_SIZE = 2

# Rows per grid step. Sweep 4096/8192/16384 on hardware; 8192 keeps per-step overhead
# under ~10% of DMA time while the lane-padded, double-buffered x+out footprint stays
# ~16 MiB (within the 32 MiB scoped VMEM requested below on all generations, and well
# inside v7x's 64 MiB physical part).
MAX_TILE = 8192


def _antifraud_kernel(x_ref, w1_ref, b1_ref, w2d_ref, b2d_ref, o_ref):
    # Fully fused per batch-tile: MXU matmul, bias, ReLU, logit-difference sigmoids.
    x = x_ref[...]                                                     # (TB, 29) f32/bf16
    h = jnp.dot(x, w1_ref[...], preferred_element_type=jnp.float32)    # MXU, f32 acc
    h = jnp.maximum(h + b1_ref[...], 0.0)                              # (TB, 20) ReLU
    # Dropout: identity in eval mode.
    # d = h @ (w2[:,1]-w2[:,0]) + (b2[:,1]-b2[:,0]); N=1, so keep it off the MXU:
    # VPU broadcast-multiply + cross-lane reduce; scalar bias delta from SMEM.
    d = jnp.sum(h * w2d_ref[...], axis=-1, keepdims=True) + b2d_ref[0]  # (TB, 1)
    # softmax over the 2 classes == [sigmoid(-d), sigmoid(d)] (exact identity).
    # Compute both explicitly (not 1 - p1) to keep relative accuracy on the small class.
    p1 = pl.reciprocal(1.0 + jnp.exp(-d), approx=False)                # EUP exp + recip
    p0 = pl.reciprocal(1.0 + jnp.exp(d), approx=False)
    o_ref[:, 0:1] = p0
    o_ref[:, 1:2] = p1


def _choose_tile(batch: int) -> int:
    if batch <= 8:
        return batch  # single full-dim block; no sublane-alignment requirement
    # Leave >= 2 grid steps so v7x's 2 TensorCores both get work ("parallel" batch axis).
    half = -(-batch // 2)          # cdiv(batch, 2)
    tb = -(-half // 8) * 8         # round up to sublane multiple of 8
    return min(MAX_TILE, tb)


def antifraud_forward(x, w1, b1, w2, b2):
    """x: (B, 29) f32 or bf16; w1: (29, 20); b1: (1, 20); w2: (20, 2); b2: (1, 2)."""
    B = x.shape[0]
    tb = _choose_tile(B)
    grid = (pl.cdiv(B, tb),)

    # bf16 input path: feed the MXU native-dtype operands; accumulation stays f32.
    w1 = w1.astype(x.dtype)
    # Fold the two output columns into a single logit-difference vector
    # (one-time ~80-byte transform of the weights, done in the wrapper).
    w2d = (w2[:, 1] - w2[:, 0]).reshape(1, HIDDEN).astype(jnp.float32)   # (1, 20)
    b2d = (b2[0, 1] - b2[0, 0]).reshape(1).astype(jnp.float32)           # scalar -> SMEM

    itemsize = jnp.dtype(x.dtype).itemsize
    cost = pl.CostEstimate(
        flops=2 * B * (INPUT_SIZE * HIDDEN + HIDDEN),
        transcendentals=2 * B,
        bytes_accessed=B * INPUT_SIZE * itemsize
        + B * OUTPUT_SIZE * 4
        + INPUT_SIZE * HIDDEN * itemsize
        + (2 * HIDDEN + 1) * 4,
    )

    return pl.pallas_call(
        _antifraud_kernel,
        out_shape=jax.ShapeDtypeStruct((B, OUTPUT_SIZE), jnp.float32),
        grid=grid,
        in_specs=[
            # x: tiled over batch. (On v7x, optionally sweep pipeline_mode=pl.Buffered(3).)
            pl.BlockSpec((tb, INPUT_SIZE), lambda i: (i, 0)),
            pl.BlockSpec((INPUT_SIZE, HIDDEN), lambda i: (0, 0)),   # weights stay resident
            pl.BlockSpec((1, HIDDEN), lambda i: (0, 0)),
            pl.BlockSpec((1, HIDDEN), lambda i: (0, 0)),
            pl.BlockSpec(memory_space=pltpu.MemorySpace.SMEM),      # scalar bias delta
        ],
        out_specs=pl.BlockSpec((tb, OUTPUT_SIZE), lambda i: (i, 0)),
        compiler_params=pltpu.CompilerParams(
            # Batch tiles are independent -> megacore sharding on v7x; harmless on v5e/v6e.
            dimension_semantics=("parallel",),
            # v5e defaults to 16 MiB scoped VMEM; 8192-row tiles need ~16 MiB double-buffered.
            vmem_limit_bytes=32 << 20,
        ),
        cost_estimate=cost,
    )(x, w1, b1, w2d, b2d)


def init_params(key):
    """Deterministic init mimicking nn.Linear's uniform(-1/sqrt(fan_in), 1/sqrt(fan_in))."""
    k1, k2, k3, k4 = jax.random.split(key, 4)
    bound1 = 1.0 / jnp.sqrt(float(INPUT_SIZE))
    bound2 = 1.0 / jnp.sqrt(float(HIDDEN))
    # Stored as (in, out) — i.e. transposed vs. PyTorch's (out, in).
    w1 = jax.random.uniform(k1, (INPUT_SIZE, HIDDEN), jnp.float32, -bound1, bound1)
    b1 = jax.random.uniform(k2, (1, HIDDEN), jnp.float32, -bound1, bound1)
    w2 = jax.random.uniform(k3, (HIDDEN, OUTPUT_SIZE), jnp.float32, -bound2, bound2)
    b2 = jax.random.uniform(k4, (1, OUTPUT_SIZE), jnp.float32, -bound2, bound2)
    return w1, b1, w2, b2


def reference_forward(x, w1, b1, w2, b2):
    h = jnp.maximum(x @ w1 + b1, 0.0)
    logits = h @ w2 + b2
    return jax.nn.softmax(logits, axis=1)


if __name__ == "__main__":
    key = jax.random.PRNGKey(0)
    k_x, k_p, k_x2 = jax.random.split(key, 3)

    w1, b1, w2, b2 = init_params(k_p)
    fwd = jax.jit(antifraud_forward)

    # Small batch: single full-dim tile.
    batch = 8
    x = jax.random.normal(k_x, (batch, INPUT_SIZE), jnp.float32)
    out = jax.block_until_ready(fwd(x, w1, b1, w2, b2))
    ref = reference_forward(x, w1, b1, w2, b2)
    assert out.shape == (batch, OUTPUT_SIZE)
    assert jnp.allclose(out, ref, atol=1e-5, rtol=1e-5), "mismatch vs reference (small batch)"
    assert jnp.allclose(jnp.sum(out, axis=1), 1.0, atol=1e-5)

    # Non-tile-aligned batch: 2 grid steps (v7x megacore path) + masked partial last tile.
    batch2 = 2500
    x2 = jax.random.normal(k_x2, (batch2, INPUT_SIZE), jnp.float32)
    out2 = jax.block_until_ready(fwd(x2, w1, b1, w2, b2))
    ref2 = reference_forward(x2, w1, b1, w2, b2)
    assert out2.shape == (batch2, OUTPUT_SIZE)
    assert jnp.allclose(out2, ref2, atol=1e-5, rtol=1e-5), "mismatch vs reference (tiled batch)"
    assert jnp.allclose(jnp.sum(out2, axis=1), 1.0, atol=1e-5)

    # bf16 input path (halves the dominant HBM read); tolerance loosened for bf16 rounding.
    out_bf16 = jax.block_until_ready(fwd(x2.astype(jnp.bfloat16), w1, b1, w2, b2))
    assert out_bf16.shape == (batch2, OUTPUT_SIZE)
    assert jnp.allclose(out_bf16, ref2, atol=2e-2), "mismatch vs reference (bf16 path)"

    print("KERNEL_OK")
</pallas_src>

<mosaic_0001>
module attributes {stable_mosaic.version = 11 : i64} {
  func.func @_antifraud_kernel(%arg0: i32, %arg1: memref<8x29xf32, #tpu.memory_space<vmem>>, %arg2: memref<29x20xf32, #tpu.memory_space<vmem>>, %arg3: memref<1x20xf32, #tpu.memory_space<vmem>>, %arg4: memref<1x20xf32, #tpu.memory_space<vmem>>, %arg5: memref<1xf32, #tpu.memory_space<smem>>, %arg6: memref<8x2xf32, #tpu.memory_space<vmem>>) attributes {dimension_semantics = [#tpu.dimension_semantics<parallel>], iteration_bounds = array<i64: 1>, scalar_prefetch = 0 : i64, scratch_operands = 0 : i64, tpu.core_type = #tpu.core_type<tc>, window_params = [{transform_indices = @transform_0, window_bounds = array<i64: 8, 29>}, {pipeline_mode = #tpu.pipeline_mode<synchronous>, transform_indices = @transform_1, window_bounds = array<i64: 29, 20>}, {pipeline_mode = #tpu.pipeline_mode<synchronous>, transform_indices = @transform_2, window_bounds = array<i64: 1, 20>}, {pipeline_mode = #tpu.pipeline_mode<synchronous>, transform_indices = @transform_3, window_bounds = array<i64: 1, 20>}, {transform_indices = @transform_4, window_bounds = array<i64: 1>}, {transform_indices = @transform_5, window_bounds = array<i64: 8, 2>}]} {
    %c0 = arith.constant 0 : index
    %c0_0 = arith.constant 0 : index
    %0 = vector.load %arg1[%c0, %c0_0] : memref<8x29xf32, #tpu.memory_space<vmem>>, vector<8x29xf32>
    %c0_1 = arith.constant 0 : index
    %c0_2 = arith.constant 0 : index
    %1 = vector.load %arg2[%c0_1, %c0_2] : memref<29x20xf32, #tpu.memory_space<vmem>>, vector<29x20xf32>
    %cst = arith.constant dense<0.000000e+00> : vector<8x20xf32>
    %2 = tpu.matmul %0, %1, %cst {dimension_numbers = #tpu.dot_dimension_numbers<[1], [0], [0], [1], [0, 0, 1, 1], [], []>} : vector<8x29xf32>, vector<29x20xf32>, vector<8x20xf32> -> vector<8x20xf32>
    %c0_3 = arith.constant 0 : index
    %c0_4 = arith.constant 0 : index
    %3 = vector.load %arg3[%c0_3, %c0_4] : memref<1x20xf32, #tpu.memory_space<vmem>>, vector<1x20xf32>
    %4 = vector.broadcast %3 : vector<1x20xf32> to vector<8x20xf32>
    %5 = arith.addf %2, %4 : vector<8x20xf32>
    %cst_5 = arith.constant 0.000000e+00 : f32
    %6 = vector.broadcast %cst_5 : f32 to vector<8x20xf32>
    %7 = arith.maximumf %5, %6 : vector<8x20xf32>
    %c0_6 = arith.constant 0 : index
    %c0_7 = arith.constant 0 : index
    %8 = vector.load %arg4[%c0_6, %c0_7] : memref<1x20xf32, #tpu.memory_space<vmem>>, vector<1x20xf32>
    %9 = vector.broadcast %8 : vector<1x20xf32> to vector<8x20xf32>
    %10 = arith.mulf %7, %9 : vector<8x20xf32>
    %cst_8 = arith.constant dense<0.000000e+00> : vector<8xf32>
    %11 = vector.multi_reduction <add>, %10, %cst_8 [1] : vector<8x20xf32> to vector<8xf32>
    %12 = vector.shape_cast %11 : vector<8xf32> to vector<8x1xf32>
    %c0_9 = arith.constant 0 : index
    %13 = memref.load %arg5[%c0_9] : memref<1xf32, #tpu.memory_space<smem>>
    %14 = vector.broadcast %13 : f32 to vector<8x1xf32>
    %15 = arith.addf %12, %14 : vector<8x1xf32>
    %cst_10 = arith.constant 0.000000e+00 : f32
    %16 = vector.broadcast %cst_10 : f32 to vector<8x1xf32>
    %17 = arith.subf %16, %15 : vector<8x1xf32>
    %18 = math.exp %17 : vector<8x1xf32>
    %cst_11 = arith.constant 1.000000e+00 : f32
    %19 = vector.broadcast %cst_11 : f32 to vector<8x1xf32>
    %20 = arith.addf %19, %18 : vector<8x1xf32>
    %21 = tpu.reciprocal %20 : vector<8x1xf32> -> vector<8x1xf32>
    %22 = math.exp %15 : vector<8x1xf32>
    %cst_12 = arith.constant 1.000000e+00 : f32
    %23 = vector.broadcast %cst_12 : f32 to vector<8x1xf32>
    %24 = arith.addf %23, %22 : vector<8x1xf32>
    %25 = tpu.reciprocal %24 : vector<8x1xf32> -> vector<8x1xf32>
    %c0_13 = arith.constant 0 : index
    %c0_14 = arith.constant 0 : index
    %26 = vector.load %arg6[%c0_13, %c0_14] : memref<8x2xf32, #tpu.memory_space<vmem>>, vector<8x1xf32>
    tpu.vector_store %arg6[%c0_13, %c0_14], %25 {strides = array<i32>} : memref<8x2xf32, #tpu.memory_space<vmem>>, vector<8x1xf32>,
    %c0_15 = arith.constant 0 : index
    %c1 = arith.constant 1 : index
    %27 = vector.load %arg6[%c0_15, %c1] : memref<8x2xf32, #tpu.memory_space<vmem>>, vector<8x1xf32>
    tpu.vector_store %arg6[%c0_15, %c1], %21 {strides = array<i32>} : memref<8x2xf32, #tpu.memory_space<vmem>>, vector<8x1xf32>,
    return
  }
  func.func @transform_0(%arg0: i32) -> (i32, i32) {
    %c0_i32 = arith.constant 0 : i32
    %c0_i32_0 = arith.constant 0 : i32
    return %arg0, %c0_i32 : i32, i32
  }
  func.func @transform_1(%arg0: i32) -> (i32, i32) {
    %c0_i32 = arith.constant 0 : i32
    %c0_i32_0 = arith.constant 0 : i32
    %c0_i32_1 = arith.constant 0 : i32
    return %c0_i32, %c0_i32_0 : i32, i32
  }
  func.func @transform_2(%arg0: i32) -> (i32, i32) {
    %c0_i32 = arith.constant 0 : i32
    %c0_i32_0 = arith.constant 0 : i32
    %c0_i32_1 = arith.constant 0 : i32
    return %c0_i32, %c0_i32_0 : i32, i32
  }
  func.func @transform_3(%arg0: i32) -> (i32, i32) {
    %c0_i32 = arith.constant 0 : i32
    %c0_i32_0 = arith.constant 0 : i32
    %c0_i32_1 = arith.constant 0 : i32
    return %c0_i32, %c0_i32_0 : i32, i32
  }
  func.func @transform_4(%arg0: i32) -> i32 {
    %c0_i32 = arith.constant 0 : i32
    %c0_i32_0 = arith.constant 0 : i32
    return %c0_i32 : i32
  }
  func.func @transform_5(%arg0: i32) -> (i32, i32) {
    %c0_i32 = arith.constant 0 : i32
    %c0_i32_0 = arith.constant 0 : i32
    return %arg0, %c0_i32 : i32, i32
  }
}

</mosaic_0001>

<llo_original>
// kernel: antifraud_forward.1
$region0: #{antifraud_forward.1}
  #allocation0 [shape = 'u32[]', space=smem, size = 0x4, offset = 0x4, fixed_abs, tag = 'smem constant byte address 0x4 - core index']
  #allocation1 [shape = 'u32[144,128]{1,0:T(1,128)}', space=vmem, size = 0x12000, scoped, tag = 'internal scratch']
  #allocation2 [shape = 'f32[1]{0:T(128)S(6)}', space=smem, size = 0x200, scoped, tag = 'scoped memory for antifraud_forward.1']
  %s0 = inlined_call_operand.vmem [shape: f32[8,29], index: 0, kind: input, shape index: {}]
  %s1 = inlined_call_operand.vmem [shape: f32[29,20], index: 1, kind: input, shape index: {}]
  %s2 = inlined_call_operand.vmem [shape: f32[1,20], index: 2, kind: input, shape index: {}]
  %s3 = inlined_call_operand.vmem [shape: f32[1,20], index: 3, kind: input, shape index: {}]
  %s4 = inlined_call_operand.<no memory space> [shape: f32[1], index: 4, kind: input, shape index: {}]
  %s5 = inlined_call_operand.vmem [shape: f32[8,2], index: 5, kind: output, shape index: {}]
  %s6 = sld [smem:[#allocation0]]
  $region30: #{antifraud_forward.1} parent=0
    _
  %s8 = ssub.s32 1, %s6
  %s9 = scalar_select 0, %s8, %s6
  %10 = sst [smem:[#allocation2]] %s4
  // Predicated region
  $region2: #{antifraud_forward.1} parent=0 // pred_check
    _
  $region3: #{antifraud_forward.1} parent=0 // pred_check_branch
    %12 = sbr.rel (0) target = $region5
  $region4: #{antifraud_forward.1} parent=0 // pred_region
    _
  $region5: #{antifraud_forward.1} parent=0 // pred_fallthru
    _
  // Predicated region
  $region6: #{antifraud_forward.1} parent=0 // pred_check
    _
  $region7: #{antifraud_forward.1} parent=0 // pred_check_branch
    %14 = sbr.rel (0) target = $region9
  $region8: #{antifraud_forward.1} parent=0 // pred_region
    _
  $region9: #{antifraud_forward.1} parent=0 // pred_fallthru
    _
  // Predicated region
  $region10: #{antifraud_forward.1} parent=0 // pred_check
    _
  $region11: #{antifraud_forward.1} parent=0 // pred_check_branch
    %16 = sbr.rel (0) target = $region13
  $region12: #{antifraud_forward.1} parent=0 // pred_region
    _
  $region13: #{antifraud_forward.1} parent=0 // pred_fallthru
    _
  // Predicated region
  $region14: #{antifraud_forward.1} parent=0 // pred_check
    _
  $region15: #{antifraud_forward.1} parent=0 // pred_check_branch
    %18 = sbr.rel (0) target = $region17
  $region16: #{antifraud_forward.1} parent=0 // pred_region
    _
  $region17: #{antifraud_forward.1} parent=0 // pred_fallthru
    _
  // Predicated region
  $region18: #{antifraud_forward.1} parent=0 // pred_check
    _
  $region19: #{antifraud_forward.1} parent=0 // pred_check_branch
    %20 = sbr.rel (0) target = $region21
  $region20: #{antifraud_forward.1} parent=0 // pred_region
    _
  $region21: #{antifraud_forward.1} parent=0 // pred_fallthru
    _
  %v21 = vld [vmem:[%s0] sm:$0xff]
  %v22 = vld [vmem:[%s1] sm:$0xff]
  %v23 = vld [vmem:[%s1 + $0x8] sm:$0xff]
  %v24 = vld [vmem:[%s1 + $0x10] sm:$0xff]
  %v25 = vld [vmem:[%s1 + $0x18] sm:$0x1f]
  %v26 = vld [vmem:[%s2] sm:$0x1]
  %v28 = vlaneseq
  %v29 = vshrl.u32 %v28, 7
  %v30 = vsub.s32 0, %v29
  %v31 = vrot.slane %v26, %v30
  %vm33 = vcmask 236544
  %v35 = vsel %vm33, %v21, 0
  %vm37 = vcmask 1044480
  %v39 = vsel %vm37, %v25, 0
  %41 = vmatprep.subr.mxu0 0.0
  %42 = vmatpush1.msra.mxu0 %v22
  %43 = vmatprep.subr.mxu0 0.0
  %44 = vmatpush1.msra.mxu0 %v23
  %45 = vmatprep.subr.mxu0 0.0
  %46 = vmatpush1.msra.mxu0 %v24
  %47 = vmatprep.subr.mxu0 0.0
  %48 = vmatpush1.msra.mxu0 %v39
  %49 = vmatprep.subr.mxu0 0.0
  %50 = vmatpush1.msra.mxu0 0.0
  %51 = vmatprep.subr.mxu0 0.0
  %52 = vmatpush1.msra.mxu0 0.0
  %53 = vmatprep.subr.mxu0 0.0
  %54 = vmatpush1.msra.mxu0 0.0
  %55 = vmatprep.subr.mxu0 0.0
  %56 = vmatpush1.msra.mxu0 0.0
  %57 = vmatprep.subr.mxu0 0.0
  %58 = vmatpush1.msra.mxu0 0.0
  %59 = vmatprep.subr.mxu0 0.0
  %60 = vmatpush1.msra.mxu0 0.0
  %61 = vmatprep.subr.mxu0 0.0
  %62 = vmatpush1.msra.mxu0 0.0
  %63 = vmatprep.subr.mxu0 0.0
  %64 = vmatpush1.msra.mxu0 0.0
  %65 = vmatprep.subr.mxu0 0.0
  %66 = vmatpush1.msra.mxu0 0.0
  %67 = vmatprep.subr.mxu0 0.0
  %68 = vmatpush1.msra.mxu0 0.0
  %69 = vmatprep.subr.mxu0 0.0
  %70 = vmatpush1.msra.mxu0 0.0
  %71 = vmatprep.subr.mxu0 0.0
  %72 = vmatpush1.msra.mxu0 0.0
  %73 = vmatprep.subr.mxu0 0.0
  %74 = vmatpush1.msra.mxu0 0.0
  %75 = vmatprep.subr.mxu0 0.0
  %76 = vmatpush1.msra.mxu0 0.0
  %77 = vmatprep.subr.mxu0 0.0
  %78 = vmatpush1.msra.mxu0 0.0
  %79 = vmatprep.subr.mxu0 0.0
  %80 = vmatpush1.msra.mxu0 0.0
  %81 = vmatprep.subr.mxu0 0.0
  %82 = vmatpush1.msra.mxu0 0.0
  %83 = vmatprep.subr.mxu0 0.0
  %84 = vmatpush1.msra.mxu0 0.0
  %85 = vmatprep.subr.mxu0 0.0
  %86 = vmatpush1.msra.mxu0 0.0
  %87 = vmatprep.subr.mxu0 0.0
  %88 = vmatpush1.msra.mxu0 0.0
  %89 = vmatprep.subr.mxu0 0.0
  %90 = vmatpush1.msra.mxu0 0.0
  %91 = vmatprep.subr.mxu0 0.0
  %92 = vmatpush1.msra.mxu0 0.0
  %93 = vmatprep.subr.mxu0 0.0
  %94 = vmatpush1.msra.mxu0 0.0
  %95 = vmatprep.subr.mxu0 0.0
  %96 = vmatpush1.msra.mxu0 0.0
  %97 = vmatprep.subr.mxu0 0.0
  %98 = vmatpush1.msra.mxu0 0.0
  %99 = vmatprep.subr.mxu0 0.0
  %100 = vmatpush1.msra.mxu0 0.0
  %101 = vmatprep.subr.mxu0 0.0
  %102 = vmatpush1.msra.mxu0 0.0
  %103 = vmatprep.subr.mxu0 0.0
  %104 = vmatpush1.msra.mxu0 0.0
  %105 = vmatprep.mubr.f32.mxu0 0.0
  %106 = vmatmul.mubr.f32.gmra.mrb[0].mxu0 %v35
  %v107 = vpop.f32.mrb[0].mxu0
  %v108 = vadd.f32 %v31, %v107
  %v109 = vpop.f32.mrb[0].mxu0
  %110 = vdwg.mxu0
  %v111 = vmax.f32 %v108, 0.0
  %v112 = vld [vmem:[%s3] sm:$0x1]
  %v114 = vlaneseq
  %v115 = vshrl.u32 %v114, 7
  %v116 = vsub.s32 0, %v115
  %v117 = vrot.slane %v112, %v116
  %v119 = vmul.f32 %v111, %v117
  %vm120 = vcmask 162816
  %v121 = vsel %vm120, %v119, 0.0
  %122 = vadd.xlane.f32.xlu0 %v121
  %v123 = vpop.xlane.xlu0 %122
  %s124 = sld [smem:[#allocation2]]
  %v125 = vstv %s124
  %v126 = vadd.f32 %v123, %v125
  %v127 = vsub.f32 0.0, %v126
  %v128 = vmul.f32 %v127, 1.442695
  %v129 = vpow.pop %v128
  %v130 = vadd.f32 %v129, 1.0
  %v131 = vrcp.pop %v130
  %v132 = vmul.f32 %v126, 1.442695
  %v133 = vpow.pop %v132
  %v134 = vadd.f32 %v133, 1.0
  %v135 = vrcp.pop %v134
  %vm136 = vcmask 7168
  %137 = vst.msk [vmem:[%s5] sm:$0xff] %vm136, %v135
  %vm138 = vcmask 15368
  %139 = vst.msk [vmem:[%s5] sm:$0xff] %vm138, %v131
  // Predicated region
  $region22: #{antifraud_forward.1} parent=0 // pred_check
    _
  $region23: #{antifraud_forward.1} parent=0 // pred_check_branch
    %141 = sbr.rel (0) target = $region25
  $region24: #{antifraud_forward.1} parent=0 // pred_region
    _
  $region25: #{antifraud_forward.1} parent=0 // pred_fallthru
    _
  // Predicated region
  $region26: #{antifraud_forward.1} parent=0 // pred_check
    _
  $region27: #{antifraud_forward.1} parent=0 // pred_check_branch
    %143 = sbr.rel (0) target = $region29
  $region28: #{antifraud_forward.1} parent=0 // pred_region
    _
  $region29: #{antifraud_forward.1} parent=0 // pred_fallthru
    _

</llo_original>
